<compile_context>
chip_gen: v6e
topology: v6e:2x2x1
jax: 0.10.0
libtpu: 0.0.40
codegen_flags: <defaults>
</compile_context>

<pallas_src>
import jax
import jax.numpy as jnp
import numpy as np
from jax.experimental import pallas as pl
from jax.experimental.pallas import tpu as pltpu


def _make_residual_block_kernel(N, H, W, C):
    NHW = N * H * W
    EPS = 1e-5
    INV_NHW = 1.0 / float(NHW)
    TAPS = [(kh - 1, kw - 1) for kh in range(3) for kw in range(3)]

    def kernel(x_ref, w1_ref, w2_ref, g1_ref, b1_ref, g2_ref, b2_ref,
               mask_ref, o_ref, col_ref):
        """
        x_ref   : (C, NHW)      activation, channels-first, spatial flattened
        w*_ref  : (C, 9*C)      conv weights, columns ordered (tap, in-channel)
        g*/b*   : (C, 1)        BatchNorm gamma / beta
        mask_ref: (9, NHW)      per-tap validity masks (0 at zero-pad positions)
        o_ref   : (C, NHW)      output (lane-dense: last dim = NHW)
        col_ref : (9*C, NHW)    VMEM scratch holding the im2col slab
        """
        x = x_ref[...]                        # (C, NHW)
        masks = mask_ref[...]                 # (9, NHW), loaded once

        def build_im2col(act):
            # 9 lane-rotated copies of `act`; out-of-image taps masked to zero.
            for t, (dh, dw) in enumerate(TAPS):
                s = dh * W + dw
                if s == 0:
                    col_ref[t * C:(t + 1) * C, :] = act
                else:
                    shifted = pltpu.roll(act, shift=(-s) % NHW, axis=1)
                    col_ref[t * C:(t + 1) * C, :] = shifted * masks[t:t + 1, :]

        def conv3x3(w_ref):
            # single K = 9*C matmul per conv (instead of 9 K=C matmuls)
            return jnp.dot(w_ref[...], col_ref[...],
                           preferred_element_type=jnp.float32)

        def batchnorm(y, g_ref, b_ref):
            # Training-mode BN: biased batch stats per channel (reduce over
            # lanes = N*H*W), then a single per-channel FMA.
            mean = jnp.sum(y, axis=1, keepdims=True) * INV_NHW
            ex2 = jnp.sum(y * y, axis=1, keepdims=True) * INV_NHW
            var = jnp.maximum(ex2 - mean * mean, 0.0)
            scale = g_ref[...] * jax.lax.rsqrt(var + EPS)
            shift = b_ref[...] - mean * scale
            return y * scale + shift

        def lrelu(y):
            return jnp.where(y >= 0, y, 0.2 * y)

        # ---- conv1 -> BN1 -> LeakyReLU(0.2) --------------------------------
        build_im2col(x)
        y = lrelu(batchnorm(conv3x3(w1_ref), g1_ref, b1_ref))

        # ---- conv2 -> BN2 ---------------------------------------------------
        build_im2col(y)
        y = batchnorm(conv3x3(w2_ref), g2_ref, b2_ref)

        # ---- residual add -> LeakyReLU(0.2) ---------------------------------
        o_ref[...] = lrelu(y + x)

    return kernel


def _tap_masks(N, H, W):
    """(9, N*H*W) f32 masks: 1 where a shifted tap reads a real pixel, 0 where
    the 3x3 conv's zero padding (or a roll wrap-around) would be read."""
    hh = np.arange(H)[:, None]
    ww = np.arange(W)[None, :]
    masks = np.zeros((9, N, H, W), np.float32)
    t = 0
    for kh in range(3):
        for kw in range(3):
            dh, dw = kh - 1, kw - 1
            valid = ((hh + dh >= 0) & (hh + dh < H) &
                     (ww + dw >= 0) & (ww + dw < W))
            masks[t] = valid.astype(np.float32)[None, :, :]
            t += 1
    return masks.reshape(9, N * H * W)


def residual_block(x_nchw, w1_oihw, w2_oihw, g1, b1, g2, b2):
    """PyTorch-convention wrapper: NCHW input, OIHW weights, (C,) BN params."""
    N, C, H, W = x_nchw.shape
    NHW = N * H * W

    # Lane-dense layout glue: (N,C,H,W) -> (C, N*H*W).
    x_flat = jnp.transpose(x_nchw, (1, 0, 2, 3)).reshape(C, NHW)
    # (O,I,KH,KW) -> (O,KH,KW,I) -> (O, 9*I): column (kh*3+kw)*C + i matches
    # the im2col row ordering built inside the kernel.
    w1_mat = jnp.transpose(w1_oihw, (0, 2, 3, 1)).reshape(C, 9 * C)
    w2_mat = jnp.transpose(w2_oihw, (0, 2, 3, 1)).reshape(C, 9 * C)
    g1c = g1.reshape(C, 1).astype(jnp.float32)
    b1c = b1.reshape(C, 1).astype(jnp.float32)
    g2c = g2.reshape(C, 1).astype(jnp.float32)
    b2c = b2.reshape(C, 1).astype(jnp.float32)
    masks = jnp.asarray(_tap_masks(N, H, W))

    vmem = pl.BlockSpec(memory_space=pltpu.MemorySpace.VMEM)
    out_flat = pl.pallas_call(
        _make_residual_block_kernel(N, H, W, C),
        out_shape=jax.ShapeDtypeStruct((C, NHW), jnp.float32),
        in_specs=[vmem] * 8,
        out_specs=vmem,
        scratch_shapes=[pltpu.VMEM((9 * C, NHW), jnp.float32)],
        compiler_params=pltpu.CompilerParams(
            vmem_limit_bytes=32 * 1024 * 1024),
    )(x_flat, w1_mat, w2_mat, g1c, b1c, g2c, b2c, masks)

    return jnp.transpose(out_flat.reshape(C, N, H, W), (1, 0, 2, 3))


# ----------------------------- pure-JAX reference -----------------------------
def reference_nchw(x, w1_oihw, w2_oihw, g1, b1, g2, b2):
    def conv(z, w):
        return jax.lax.conv_general_dilated(
            z, w, window_strides=(1, 1), padding=((1, 1), (1, 1)),
            dimension_numbers=("NCHW", "OIHW", "NCHW"))

    def bn(z, g, b):
        mean = z.mean(axis=(0, 2, 3), keepdims=True)
        var = ((z - mean) ** 2).mean(axis=(0, 2, 3), keepdims=True)
        return ((z - mean) * jax.lax.rsqrt(var + 1e-5)
                * g.reshape(1, -1, 1, 1) + b.reshape(1, -1, 1, 1))

    lrelu = lambda z: jnp.where(z >= 0, z, 0.2 * z)
    y = lrelu(bn(conv(x, w1_oihw), g1, b1))
    y = bn(conv(y, w2_oihw), g2, b2)
    return lrelu(y + x)


if __name__ == "__main__":
    N, C, H, W = 2, 4, 16, 16   # channel_in == channel_out (required by residual add)
    key = jax.random.PRNGKey(0)
    kx, kw1, kw2 = jax.random.split(key, 3)

    # Input in PyTorch NCHW convention.
    x_nchw = jax.random.normal(kx, (N, C, H, W), dtype=jnp.float32)

    # Conv weights (OIHW), Kaiming-normal init: std = sqrt(2 / fan_in), fan_in = C*3*3.
    std = float(np.sqrt(2.0 / (C * 3 * 3)))
    w1_oihw = jax.random.normal(kw1, (C, C, 3, 3), dtype=jnp.float32) * std
    w2_oihw = jax.random.normal(kw2, (C, C, 3, 3), dtype=jnp.float32) * std

    # BatchNorm affine params: PyTorch default init (gamma=1, beta=0).
    g1 = jnp.ones((C,), jnp.float32)
    b1 = jnp.zeros((C,), jnp.float32)
    g2 = jnp.ones((C,), jnp.float32)
    b2 = jnp.zeros((C,), jnp.float32)

    out = residual_block(x_nchw, w1_oihw, w2_oihw, g1, b1, g2, b2)
    out = jax.block_until_ready(out)

    ref = reference_nchw(x_nchw, w1_oihw, w2_oihw, g1, b1, g2, b2)
    ref = jax.block_until_ready(ref)

    np.testing.assert_allclose(np.asarray(out), np.asarray(ref),
                               rtol=2e-2, atol=2e-2)
    print("KERNEL_OK")
</pallas_src>

<mosaic_0001>
module attributes {stable_mosaic.version = 11 : i64} {
  func.func @kernel(%arg0: memref<4x512xf32, #tpu.memory_space<vmem>>, %arg1: memref<4x36xf32, #tpu.memory_space<vmem>>, %arg2: memref<4x36xf32, #tpu.memory_space<vmem>>, %arg3: memref<4x1xf32, #tpu.memory_space<vmem>>, %arg4: memref<4x1xf32, #tpu.memory_space<vmem>>, %arg5: memref<4x1xf32, #tpu.memory_space<vmem>>, %arg6: memref<4x1xf32, #tpu.memory_space<vmem>>, %arg7: memref<9x512xf32, #tpu.memory_space<vmem>>, %arg8: memref<4x512xf32, #tpu.memory_space<vmem>>, %arg9: memref<36x512xf32, #tpu.memory_space<vmem>>) attributes {dimension_semantics = [], scalar_prefetch = 0 : i64, scratch_operands = 1 : i64, tpu.core_type = #tpu.core_type<tc>} {
    %c0 = arith.constant 0 : index
    %c0_0 = arith.constant 0 : index
    %0 = vector.load %arg0[%c0, %c0_0] : memref<4x512xf32, #tpu.memory_space<vmem>>, vector<4x512xf32>
    %c0_1 = arith.constant 0 : index
    %c0_2 = arith.constant 0 : index
    %1 = vector.load %arg7[%c0_1, %c0_2] : memref<9x512xf32, #tpu.memory_space<vmem>>, vector<9x512xf32>
    %c17_i32 = arith.constant 17 : i32
    %2 = tpu.dynamic_rotate %0 by %c17_i32 dim 1 : vector<4x512xf32>, i32 -> vector<4x512xf32>
    %3 = vector.extract_strided_slice %1 {offsets = [0, 0], sizes = [1, 512], strides = [1, 1]} : vector<9x512xf32> to vector<1x512xf32>
    %4 = vector.broadcast %3 : vector<1x512xf32> to vector<4x512xf32>
    %5 = arith.mulf %2, %4 : vector<4x512xf32>
    %c0_3 = arith.constant 0 : index
    %c0_4 = arith.constant 0 : index
    %6 = vector.load %arg9[%c0_3, %c0_4] : memref<36x512xf32, #tpu.memory_space<vmem>>, vector<4x512xf32>
    tpu.vector_store %arg9[%c0_3, %c0_4], %5 {strides = array<i32>} : memref<36x512xf32, #tpu.memory_space<vmem>>, vector<4x512xf32>,
    %c16_i32 = arith.constant 16 : i32
    %7 = tpu.dynamic_rotate %0 by %c16_i32 dim 1 : vector<4x512xf32>, i32 -> vector<4x512xf32>
    %8 = vector.extract_strided_slice %1 {offsets = [1, 0], sizes = [1, 512], strides = [1, 1]} : vector<9x512xf32> to vector<1x512xf32>
    %9 = vector.broadcast %8 : vector<1x512xf32> to vector<4x512xf32>
    %10 = arith.mulf %7, %9 : vector<4x512xf32>
    %c4 = arith.constant 4 : index
    %c0_5 = arith.constant 0 : index
    %11 = vector.load %arg9[%c4, %c0_5] : memref<36x512xf32, #tpu.memory_space<vmem>>, vector<4x512xf32>
    tpu.vector_store %arg9[%c4, %c0_5], %10 {strides = array<i32>} : memref<36x512xf32, #tpu.memory_space<vmem>>, vector<4x512xf32>,
    %c15_i32 = arith.constant 15 : i32
    %12 = tpu.dynamic_rotate %0 by %c15_i32 dim 1 : vector<4x512xf32>, i32 -> vector<4x512xf32>
    %13 = vector.extract_strided_slice %1 {offsets = [2, 0], sizes = [1, 512], strides = [1, 1]} : vector<9x512xf32> to vector<1x512xf32>
    %14 = vector.broadcast %13 : vector<1x512xf32> to vector<4x512xf32>
    %15 = arith.mulf %12, %14 : vector<4x512xf32>
    %c8 = arith.constant 8 : index
    %c0_6 = arith.constant 0 : index
    %16 = vector.load %arg9[%c8, %c0_6] : memref<36x512xf32, #tpu.memory_space<vmem>>, vector<4x512xf32>
    tpu.vector_store %arg9[%c8, %c0_6], %15 {strides = array<i32>} : memref<36x512xf32, #tpu.memory_space<vmem>>, vector<4x512xf32>,
    %c1_i32 = arith.constant 1 : i32
    %17 = tpu.dynamic_rotate %0 by %c1_i32 dim 1 : vector<4x512xf32>, i32 -> vector<4x512xf32>
    %18 = vector.extract_strided_slice %1 {offsets = [3, 0], sizes = [1, 512], strides = [1, 1]} : vector<9x512xf32> to vector<1x512xf32>
    %19 = vector.broadcast %18 : vector<1x512xf32> to vector<4x512xf32>
    %20 = arith.mulf %17, %19 : vector<4x512xf32>
    %c12 = arith.constant 12 : index
    %c0_7 = arith.constant 0 : index
    %21 = vector.load %arg9[%c12, %c0_7] : memref<36x512xf32, #tpu.memory_space<vmem>>, vector<4x512xf32>
    tpu.vector_store %arg9[%c12, %c0_7], %20 {strides = array<i32>} : memref<36x512xf32, #tpu.memory_space<vmem>>, vector<4x512xf32>,
    %c16 = arith.constant 16 : index
    %c0_8 = arith.constant 0 : index
    %22 = vector.load %arg9[%c16, %c0_8] : memref<36x512xf32, #tpu.memory_space<vmem>>, vector<4x512xf32>
    tpu.vector_store %arg9[%c16, %c0_8], %0 {strides = array<i32>} : memref<36x512xf32, #tpu.memory_space<vmem>>, vector<4x512xf32>,
    %c511_i32 = arith.constant 511 : i32
    %23 = tpu.dynamic_rotate %0 by %c511_i32 dim 1 : vector<4x512xf32>, i32 -> vector<4x512xf32>
    %24 = vector.extract_strided_slice %1 {offsets = [5, 0], sizes = [1, 512], strides = [1, 1]} : vector<9x512xf32> to vector<1x512xf32>
    %25 = vector.broadcast %24 : vector<1x512xf32> to vector<4x512xf32>
    %26 = arith.mulf %23, %25 : vector<4x512xf32>
    %c20 = arith.constant 20 : index
    %c0_9 = arith.constant 0 : index
    %27 = vector.load %arg9[%c20, %c0_9] : memref<36x512xf32, #tpu.memory_space<vmem>>, vector<4x512xf32>
    tpu.vector_store %arg9[%c20, %c0_9], %26 {strides = array<i32>} : memref<36x512xf32, #tpu.memory_space<vmem>>, vector<4x512xf32>,
    %c497_i32 = arith.constant 497 : i32
    %28 = tpu.dynamic_rotate %0 by %c497_i32 dim 1 : vector<4x512xf32>, i32 -> vector<4x512xf32>
    %29 = vector.extract_strided_slice %1 {offsets = [6, 0], sizes = [1, 512], strides = [1, 1]} : vector<9x512xf32> to vector<1x512xf32>
    %30 = vector.broadcast %29 : vector<1x512xf32> to vector<4x512xf32>
    %31 = arith.mulf %28, %30 : vector<4x512xf32>
    %c24 = arith.constant 24 : index
    %c0_10 = arith.constant 0 : index
    %32 = vector.load %arg9[%c24, %c0_10] : memref<36x512xf32, #tpu.memory_space<vmem>>, vector<4x512xf32>
    tpu.vector_store %arg9[%c24, %c0_10], %31 {strides = array<i32>} : memref<36x512xf32, #tpu.memory_space<vmem>>, vector<4x512xf32>,
    %c496_i32 = arith.constant 496 : i32
    %33 = tpu.dynamic_rotate %0 by %c496_i32 dim 1 : vector<4x512xf32>, i32 -> vector<4x512xf32>
    %34 = vector.extract_strided_slice %1 {offsets = [7, 0], sizes = [1, 512], strides = [1, 1]} : vector<9x512xf32> to vector<1x512xf32>
    %35 = vector.broadcast %34 : vector<1x512xf32> to vector<4x512xf32>
    %36 = arith.mulf %33, %35 : vector<4x512xf32>
    %c28 = arith.constant 28 : index
    %c0_11 = arith.constant 0 : index
    %37 = vector.load %arg9[%c28, %c0_11] : memref<36x512xf32, #tpu.memory_space<vmem>>, vector<4x512xf32>
    tpu.vector_store %arg9[%c28, %c0_11], %36 {strides = array<i32>} : memref<36x512xf32, #tpu.memory_space<vmem>>, vector<4x512xf32>,
    %c495_i32 = arith.constant 495 : i32
    %38 = tpu.dynamic_rotate %0 by %c495_i32 dim 1 : vector<4x512xf32>, i32 -> vector<4x512xf32>
    %39 = vector.extract_strided_slice %1 {offsets = [8, 0], sizes = [1, 512], strides = [1, 1]} : vector<9x512xf32> to vector<1x512xf32>
    %40 = vector.broadcast %39 : vector<1x512xf32> to vector<4x512xf32>
    %41 = arith.mulf %38, %40 : vector<4x512xf32>
    %c32 = arith.constant 32 : index
    %c0_12 = arith.constant 0 : index
    %42 = vector.load %arg9[%c32, %c0_12] : memref<36x512xf32, #tpu.memory_space<vmem>>, vector<4x512xf32>
    tpu.vector_store %arg9[%c32, %c0_12], %41 {strides = array<i32>} : memref<36x512xf32, #tpu.memory_space<vmem>>, vector<4x512xf32>,
    %c0_13 = arith.constant 0 : index
    %c0_14 = arith.constant 0 : index
    %43 = vector.load %arg1[%c0_13, %c0_14] : memref<4x36xf32, #tpu.memory_space<vmem>>, vector<4x36xf32>
    %c0_15 = arith.constant 0 : index
    %c0_16 = arith.constant 0 : index
    %44 = vector.load %arg9[%c0_15, %c0_16] : memref<36x512xf32, #tpu.memory_space<vmem>>, vector<36x512xf32>
    %cst = arith.constant dense<0.000000e+00> : vector<4x512xf32>
    %45 = tpu.matmul %43, %44, %cst {dimension_numbers = #tpu.dot_dimension_numbers<[1], [0], [0], [1], [0, 0, 1, 1], [], []>} : vector<4x36xf32>, vector<36x512xf32>, vector<4x512xf32> -> vector<4x512xf32>
    %cst_17 = arith.constant dense<0.000000e+00> : vector<4xf32>
    %46 = vector.multi_reduction <add>, %45, %cst_17 [1] : vector<4x512xf32> to vector<4xf32>
    %47 = vector.shape_cast %46 : vector<4xf32> to vector<4x1xf32>
    %cst_18 = arith.constant 0.001953125 : f32
    %48 = vector.broadcast %cst_18 : f32 to vector<4x1xf32>
    %49 = arith.mulf %47, %48 : vector<4x1xf32>
    %50 = arith.mulf %45, %45 : vector<4x512xf32>
    %cst_19 = arith.constant dense<0.000000e+00> : vector<4xf32>
    %51 = vector.multi_reduction <add>, %50, %cst_19 [1] : vector<4x512xf32> to vector<4xf32>
    %52 = vector.shape_cast %51 : vector<4xf32> to vector<4x1xf32>
    %cst_20 = arith.constant 0.001953125 : f32
    %53 = vector.broadcast %cst_20 : f32 to vector<4x1xf32>
    %54 = arith.mulf %52, %53 : vector<4x1xf32>
    %55 = arith.mulf %49, %49 : vector<4x1xf32>
    %56 = arith.subf %54, %55 : vector<4x1xf32>
    %cst_21 = arith.constant 0.000000e+00 : f32
    %57 = vector.broadcast %cst_21 : f32 to vector<4x1xf32>
    %58 = arith.maximumf %56, %57 : vector<4x1xf32>
    %c0_22 = arith.constant 0 : index
    %c0_23 = arith.constant 0 : index
    %59 = vector.load %arg3[%c0_22, %c0_23] : memref<4x1xf32, #tpu.memory_space<vmem>>, vector<4x1xf32>
    %cst_24 = arith.constant 9.99999974E-6 : f32
    %60 = vector.broadcast %cst_24 : f32 to vector<4x1xf32>
    %61 = arith.addf %58, %60 : vector<4x1xf32>
    %62 = math.rsqrt %61 : vector<4x1xf32>
    %63 = arith.mulf %59, %62 : vector<4x1xf32>
    %c0_25 = arith.constant 0 : index
    %c0_26 = arith.constant 0 : index
    %64 = vector.load %arg4[%c0_25, %c0_26] : memref<4x1xf32, #tpu.memory_space<vmem>>, vector<4x1xf32>
    %65 = arith.mulf %49, %63 : vector<4x1xf32>
    %66 = arith.subf %64, %65 : vector<4x1xf32>
    %67 = vector.broadcast %63 : vector<4x1xf32> to vector<4x512xf32>
    %68 = arith.mulf %45, %67 : vector<4x512xf32>
    %69 = vector.broadcast %66 : vector<4x1xf32> to vector<4x512xf32>
    %70 = arith.addf %68, %69 : vector<4x512xf32>
    %cst_27 = arith.constant 0.000000e+00 : f32
    %71 = vector.broadcast %cst_27 : f32 to vector<4x512xf32>
    %72 = arith.cmpf oge, %70, %71 : vector<4x512xf32>
    %cst_28 = arith.constant 2.000000e-01 : f32
    %73 = vector.broadcast %cst_28 : f32 to vector<4x512xf32>
    %74 = arith.mulf %73, %70 : vector<4x512xf32>
    %75 = arith.select %72, %70, %74 : vector<4x512xi1>, vector<4x512xf32>
    %c17_i32_29 = arith.constant 17 : i32
    %76 = tpu.dynamic_rotate %75 by %c17_i32_29 dim 1 : vector<4x512xf32>, i32 -> vector<4x512xf32>
    %77 = vector.extract_strided_slice %1 {offsets = [0, 0], sizes = [1, 512], strides = [1, 1]} : vector<9x512xf32> to vector<1x512xf32>
    %78 = vector.broadcast %77 : vector<1x512xf32> to vector<4x512xf32>
    %79 = arith.mulf %76, %78 : vector<4x512xf32>
    %c0_30 = arith.constant 0 : index
    %c0_31 = arith.constant 0 : index
    %80 = vector.load %arg9[%c0_30, %c0_31] : memref<36x512xf32, #tpu.memory_space<vmem>>, vector<4x512xf32>
    tpu.vector_store %arg9[%c0_30, %c0_31], %79 {strides = array<i32>} : memref<36x512xf32, #tpu.memory_space<vmem>>, vector<4x512xf32>,
    %c16_i32_32 = arith.constant 16 : i32
    %81 = tpu.dynamic_rotate %75 by %c16_i32_32 dim 1 : vector<4x512xf32>, i32 -> vector<4x512xf32>
    %82 = vector.extract_strided_slice %1 {offsets = [1, 0], sizes = [1, 512], strides = [1, 1]} : vector<9x512xf32> to vector<1x512xf32>
    %83 = vector.broadcast %82 : vector<1x512xf32> to vector<4x512xf32>
    %84 = arith.mulf %81, %83 : vector<4x512xf32>
    %c4_33 = arith.constant 4 : index
    %c0_34 = arith.constant 0 : index
    %85 = vector.load %arg9[%c4_33, %c0_34] : memref<36x512xf32, #tpu.memory_space<vmem>>, vector<4x512xf32>
    tpu.vector_store %arg9[%c4_33, %c0_34], %84 {strides = array<i32>} : memref<36x512xf32, #tpu.memory_space<vmem>>, vector<4x512xf32>,
    %c15_i32_35 = arith.constant 15 : i32
    %86 = tpu.dynamic_rotate %75 by %c15_i32_35 dim 1 : vector<4x512xf32>, i32 -> vector<4x512xf32>
    %87 = vector.extract_strided_slice %1 {offsets = [2, 0], sizes = [1, 512], strides = [1, 1]} : vector<9x512xf32> to vector<1x512xf32>
    %88 = vector.broadcast %87 : vector<1x512xf32> to vector<4x512xf32>
    %89 = arith.mulf %86, %88 : vector<4x512xf32>
    %c8_36 = arith.constant 8 : index
    %c0_37 = arith.constant 0 : index
    %90 = vector.load %arg9[%c8_36, %c0_37] : memref<36x512xf32, #tpu.memory_space<vmem>>, vector<4x512xf32>
    tpu.vector_store %arg9[%c8_36, %c0_37], %89 {strides = array<i32>} : memref<36x512xf32, #tpu.memory_space<vmem>>, vector<4x512xf32>,
    %c1_i32_38 = arith.constant 1 : i32
    %91 = tpu.dynamic_rotate %75 by %c1_i32_38 dim 1 : vector<4x512xf32>, i32 -> vector<4x512xf32>
    %92 = vector.extract_strided_slice %1 {offsets = [3, 0], sizes = [1, 512], strides = [1, 1]} : vector<9x512xf32> to vector<1x512xf32>
    %93 = vector.broadcast %92 : vector<1x512xf32> to vector<4x512xf32>
    %94 = arith.mulf %91, %93 : vector<4x512xf32>
    %c12_39 = arith.constant 12 : index
    %c0_40 = arith.constant 0 : index
    %95 = vector.load %arg9[%c12_39, %c0_40] : memref<36x512xf32, #tpu.memory_space<vmem>>, vector<4x512xf32>
    tpu.vector_store %arg9[%c12_39, %c0_40], %94 {strides = array<i32>} : memref<36x512xf32, #tpu.memory_space<vmem>>, vector<4x512xf32>,
    %c16_41 = arith.constant 16 : index
    %c0_42 = arith.constant 0 : index
    %96 = vector.load %arg9[%c16_41, %c0_42] : memref<36x512xf32, #tpu.memory_space<vmem>>, vector<4x512xf32>
    tpu.vector_store %arg9[%c16_41, %c0_42], %75 {strides = array<i32>} : memref<36x512xf32, #tpu.memory_space<vmem>>, vector<4x512xf32>,
    %c511_i32_43 = arith.constant 511 : i32
    %97 = tpu.dynamic_rotate %75 by %c511_i32_43 dim 1 : vector<4x512xf32>, i32 -> vector<4x512xf32>
    %98 = vector.extract_strided_slice %1 {offsets = [5, 0], sizes = [1, 512], strides = [1, 1]} : vector<9x512xf32> to vector<1x512xf32>
    %99 = vector.broadcast %98 : vector<1x512xf32> to vector<4x512xf32>
    %100 = arith.mulf %97, %99 : vector<4x512xf32>
    %c20_44 = arith.constant 20 : index
    %c0_45 = arith.constant 0 : index
    %101 = vector.load %arg9[%c20_44, %c0_45] : memref<36x512xf32, #tpu.memory_space<vmem>>, vector<4x512xf32>
    tpu.vector_store %arg9[%c20_44, %c0_45], %100 {strides = array<i32>} : memref<36x512xf32, #tpu.memory_space<vmem>>, vector<4x512xf32>,
    %c497_i32_46 = arith.constant 497 : i32
    %102 = tpu.dynamic_rotate %75 by %c497_i32_46 dim 1 : vector<4x512xf32>, i32 -> vector<4x512xf32>
    %103 = vector.extract_strided_slice %1 {offsets = [6, 0], sizes = [1, 512], strides = [1, 1]} : vector<9x512xf32> to vector<1x512xf32>
    %104 = vector.broadcast %103 : vector<1x512xf32> to vector<4x512xf32>
    %105 = arith.mulf %102, %104 : vector<4x512xf32>
    %c24_47 = arith.constant 24 : index
    %c0_48 = arith.constant 0 : index
    %106 = vector.load %arg9[%c24_47, %c0_48] : memref<36x512xf32, #tpu.memory_space<vmem>>, vector<4x512xf32>
    tpu.vector_store %arg9[%c24_47, %c0_48], %105 {strides = array<i32>} : memref<36x512xf32, #tpu.memory_space<vmem>>, vector<4x512xf32>,
    %c496_i32_49 = arith.constant 496 : i32
    %107 = tpu.dynamic_rotate %75 by %c496_i32_49 dim 1 : vector<4x512xf32>, i32 -> vector<4x512xf32>
    %108 = vector.extract_strided_slice %1 {offsets = [7, 0], sizes = [1, 512], strides = [1, 1]} : vector<9x512xf32> to vector<1x512xf32>
    %109 = vector.broadcast %108 : vector<1x512xf32> to vector<4x512xf32>
    %110 = arith.mulf %107, %109 : vector<4x512xf32>
    %c28_50 = arith.constant 28 : index
    %c0_51 = arith.constant 0 : index
    %111 = vector.load %arg9[%c28_50, %c0_51] : memref<36x512xf32, #tpu.memory_space<vmem>>, vector<4x512xf32>
    tpu.vector_store %arg9[%c28_50, %c0_51], %110 {strides = array<i32>} : memref<36x512xf32, #tpu.memory_space<vmem>>, vector<4x512xf32>,
    %c495_i32_52 = arith.constant 495 : i32
    %112 = tpu.dynamic_rotate %75 by %c495_i32_52 dim 1 : vector<4x512xf32>, i32 -> vector<4x512xf32>
    %113 = vector.extract_strided_slice %1 {offsets = [8, 0], sizes = [1, 512], strides = [1, 1]} : vector<9x512xf32> to vector<1x512xf32>
    %114 = vector.broadcast %113 : vector<1x512xf32> to vector<4x512xf32>
    %115 = arith.mulf %112, %114 : vector<4x512xf32>
    %c32_53 = arith.constant 32 : index
    %c0_54 = arith.constant 0 : index
    %116 = vector.load %arg9[%c32_53, %c0_54] : memref<36x512xf32, #tpu.memory_space<vmem>>, vector<4x512xf32>
    tpu.vector_store %arg9[%c32_53, %c0_54], %115 {strides = array<i32>} : memref<36x512xf32, #tpu.memory_space<vmem>>, vector<4x512xf32>,
    %c0_55 = arith.constant 0 : index
    %c0_56 = arith.constant 0 : index
    %117 = vector.load %arg2[%c0_55, %c0_56] : memref<4x36xf32, #tpu.memory_space<vmem>>, vector<4x36xf32>
    %c0_57 = arith.constant 0 : index
    %c0_58 = arith.constant 0 : index
    %118 = vector.load %arg9[%c0_57, %c0_58] : memref<36x512xf32, #tpu.memory_space<vmem>>, vector<36x512xf32>
    %cst_59 = arith.constant dense<0.000000e+00> : vector<4x512xf32>
    %119 = tpu.matmul %117, %118, %cst_59 {dimension_numbers = #tpu.dot_dimension_numbers<[1], [0], [0], [1], [0, 0, 1, 1], [], []>} : vector<4x36xf32>, vector<36x512xf32>, vector<4x512xf32> -> vector<4x512xf32>
    %cst_60 = arith.constant dense<0.000000e+00> : vector<4xf32>
    %120 = vector.multi_reduction <add>, %119, %cst_60 [1] : vector<4x512xf32> to vector<4xf32>
    %121 = vector.shape_cast %120 : vector<4xf32> to vector<4x1xf32>
    %cst_61 = arith.constant 0.001953125 : f32
    %122 = vector.broadcast %cst_61 : f32 to vector<4x1xf32>
    %123 = arith.mulf %121, %122 : vector<4x1xf32>
    %124 = arith.mulf %119, %119 : vector<4x512xf32>
    %cst_62 = arith.constant dense<0.000000e+00> : vector<4xf32>
    %125 = vector.multi_reduction <add>, %124, %cst_62 [1] : vector<4x512xf32> to vector<4xf32>
    %126 = vector.shape_cast %125 : vector<4xf32> to vector<4x1xf32>
    %cst_63 = arith.constant 0.001953125 : f32
    %127 = vector.broadcast %cst_63 : f32 to vector<4x1xf32>
    %128 = arith.mulf %126, %127 : vector<4x1xf32>
    %129 = arith.mulf %123, %123 : vector<4x1xf32>
    %130 = arith.subf %128, %129 : vector<4x1xf32>
    %cst_64 = arith.constant 0.000000e+00 : f32
    %131 = vector.broadcast %cst_64 : f32 to vector<4x1xf32>
    %132 = arith.maximumf %130, %131 : vector<4x1xf32>
    %c0_65 = arith.constant 0 : index
    %c0_66 = arith.constant 0 : index
    %133 = vector.load %arg5[%c0_65, %c0_66] : memref<4x1xf32, #tpu.memory_space<vmem>>, vector<4x1xf32>
    %cst_67 = arith.constant 9.99999974E-6 : f32
    %134 = vector.broadcast %cst_67 : f32 to vector<4x1xf32>
    %135 = arith.addf %132, %134 : vector<4x1xf32>
    %136 = math.rsqrt %135 : vector<4x1xf32>
    %137 = arith.mulf %133, %136 : vector<4x1xf32>
    %c0_68 = arith.constant 0 : index
    %c0_69 = arith.constant 0 : index
    %138 = vector.load %arg6[%c0_68, %c0_69] : memref<4x1xf32, #tpu.memory_space<vmem>>, vector<4x1xf32>
    %139 = arith.mulf %123, %137 : vector<4x1xf32>
    %140 = arith.subf %138, %139 : vector<4x1xf32>
    %141 = vector.broadcast %137 : vector<4x1xf32> to vector<4x512xf32>
    %142 = arith.mulf %119, %141 : vector<4x512xf32>
    %143 = vector.broadcast %140 : vector<4x1xf32> to vector<4x512xf32>
    %144 = arith.addf %142, %143 : vector<4x512xf32>
    %145 = arith.addf %144, %0 : vector<4x512xf32>
    %cst_70 = arith.constant 0.000000e+00 : f32
    %146 = vector.broadcast %cst_70 : f32 to vector<4x512xf32>
    %147 = arith.cmpf oge, %145, %146 : vector<4x512xf32>
    %cst_71 = arith.constant 2.000000e-01 : f32
    %148 = vector.broadcast %cst_71 : f32 to vector<4x512xf32>
    %149 = arith.mulf %148, %145 : vector<4x512xf32>
    %150 = arith.select %147, %145, %149 : vector<4x512xi1>, vector<4x512xf32>
    %c0_72 = arith.constant 0 : index
    %c0_73 = arith.constant 0 : index
    %151 = vector.load %arg8[%c0_72, %c0_73] : memref<4x512xf32, #tpu.memory_space<vmem>>, vector<4x512xf32>
    tpu.vector_store %arg8[%c0_72, %c0_73], %150 {strides = array<i32>} : memref<4x512xf32, #tpu.memory_space<vmem>>, vector<4x512xf32>,
    return
  }
}

</mosaic_0001>

<llo_original>
// kernel: tpu_custom_call.1
$region0: #{tpu_custom_call.1}
  #allocation0 [shape = 'u32[]', space=smem, size = 0x4, offset = 0x4, fixed_abs, tag = 'smem constant byte address 0x4 - core index']
  #allocation1 [shape = 'u32[144,128]{1,0:T(1,128)}', space=vmem, size = 0x12000, scoped, tag = 'internal scratch']
  #allocation2 [shape = 'f32[36,512]{1,0:T(8,128)}', space=vmem, size = 0x14000, scoped, tag = 'scratch operand']
  %s0 = inlined_call_operand.vmem [shape: f32[4,512], index: 0, kind: input, shape index: {}]
  %s1 = inlined_call_operand.vmem [shape: f32[4,36], index: 1, kind: input, shape index: {}]
  %s2 = inlined_call_operand.hbm [shape: f32[4,36], index: 2, kind: input, shape index: {}]
  %s3 = inlined_call_operand.vmem [shape: f32[4,1], index: 3, kind: input, shape index: {}]
  %s4 = inlined_call_operand.vmem [shape: f32[4,1], index: 4, kind: input, shape index: {}]
  %s5 = inlined_call_operand.vmem [shape: f32[4,1], index: 5, kind: input, shape index: {}]
  %s6 = inlined_call_operand.vmem [shape: f32[4,1], index: 6, kind: input, shape index: {}]
  %s7 = inlined_call_operand.hbm [shape: f32[9,512], index: 7, kind: input, shape index: {}]
  %s8 = inlined_call_operand.hbm [shape: f32[4,512], index: 8, kind: output, shape index: {}]
  %s9 = sld [smem:[#allocation0]]
  $region50: #{tpu_custom_call.1} parent=0
    _
  %s11 = ssub.s32 1, %s9
  %s12 = scalar_select 0, %s11, %s9
  $region1: #{tpu_custom_call.1} parent=0
    #allocation3 [shape = 'u8[2048]{0}', space=vmem, size = 0x800, scoped, tag = 'input window, operand 2, single buffered']
    #allocation4 [shape = 's32[1]{0}', space=sflag, size = 0x4, scoped, tag = 'scoped memory for tpu_custom_call.1']
    #allocation5 [shape = 's32[1]{0}', space=sflag, size = 0x4, scoped, tag = 'scoped memory for tpu_custom_call.1']
    #allocation6 [shape = 'u8[32768]{0}', space=vmem, size = 0x8000, scoped, tag = 'input window, operand 7, single buffered']
    #allocation7 [shape = 's32[1]{0}', space=sflag, size = 0x4, scoped, tag = 'scoped memory for tpu_custom_call.1']
    #allocation8 [shape = 'u8[8192]{0}', space=vmem, size = 0x2000, scoped, tag = 'output window, operand 0, single buffered']
    %13 = vsyncpa [#allocation4], 0
    %14 = vsyncpa [#allocation7], 0
    %15 = vsyncpa [#allocation5], 0
    // Predicated region
    $region2: #{tpu_custom_call.1} parent=1 // pred_check
      _
    $region3: #{tpu_custom_call.1} parent=1 // pred_check_branch
      %17 = sbr.rel (0) target = $region5
    $region4: #{tpu_custom_call.1} parent=1 // pred_region
      _
    $region5: #{tpu_custom_call.1} parent=1 // pred_fallthru
      _
    // Predicated region
    $region6: #{tpu_custom_call.1} parent=1 // pred_check
      _
    $region7: #{tpu_custom_call.1} parent=1 // pred_check_branch
      %19 = sbr.rel (0) target = $region9
    $region8: #{tpu_custom_call.1} parent=1 // pred_region
      _
    $region9: #{tpu_custom_call.1} parent=1 // pred_fallthru
      _
    // Predicated region
    $region10: #{tpu_custom_call.1} parent=1 // pred_check
      _
    $region11: #{tpu_custom_call.1} parent=1 // pred_check_branch
      %21 = sbr.rel (0) target = $region13
    $region12: #{tpu_custom_call.1} parent=1 // pred_region
      %s23 = ssub.s32 64, 64
      %24 = vsyncadd [#allocation4], %s23
      %s26 = sshll.u32 [#allocation3], 4
      %s27 = int_to_ptr.vmem [resolvable:$true] %s26
      %29 = dma.hbm_to_vmem [thread:$0]  %s2, 64, %s27, [#allocation4]
    $region13: #{tpu_custom_call.1} parent=1 // pred_fallthru
      _
    // Predicated region
    $region14: #{tpu_custom_call.1} parent=1 // pred_check
      _
    $region15: #{tpu_custom_call.1} parent=1 // pred_check_branch
      %31 = sbr.rel (0) target = $region17
    $region16: #{tpu_custom_call.1} parent=1 // pred_region
      _
    $region17: #{tpu_custom_call.1} parent=1 // pred_fallthru
      _
    // Predicated region
    $region18: #{tpu_custom_call.1} parent=1 // pred_check
      _
    $region19: #{tpu_custom_call.1} parent=1 // pred_check_branch
      %33 = sbr.rel (0) target = $region21
    $region20: #{tpu_custom_call.1} parent=1 // pred_region
      _
    $region21: #{tpu_custom_call.1} parent=1 // pred_fallthru
      _
    // Predicated region
    $region22: #{tpu_custom_call.1} parent=1 // pred_check
      _
    $region23: #{tpu_custom_call.1} parent=1 // pred_check_branch
      %35 = sbr.rel (0) target = $region25
    $region24: #{tpu_custom_call.1} parent=1 // pred_region
      _
    $region25: #{tpu_custom_call.1} parent=1 // pred_fallthru
      _
    // Predicated region
    $region26: #{tpu_custom_call.1} parent=1 // pred_check
      _
    $region27: #{tpu_custom_call.1} parent=1 // pred_check_branch
      %37 = sbr.rel (0) target = $region29
    $region28: #{tpu_custom_call.1} parent=1 // pred_region
      _
    $region29: #{tpu_custom_call.1} parent=1 // pred_fallthru
      _
    // Predicated region
    $region30: #{tpu_custom_call.1} parent=1 // pred_check
      _
    $region31: #{tpu_custom_call.1} parent=1 // pred_check_branch
      %39 = sbr.rel (0) target = $region33
    $region32: #{tpu_custom_call.1} parent=1 // pred_region
      %s41 = ssub.s32 1024, 1024
      %42 = vsyncadd [#allocation7], %s41
      %s43 = sshll.u32 [#allocation6], 4
      %s44 = int_to_ptr.vmem [resolvable:$true] %s43
      %49 = dma.hbm_to_vmem [thread:$0]  %s7, 1024, %s44, [#allocation7], 512, 512, 32
    $region33: #{tpu_custom_call.1} parent=1 // pred_fallthru
      _
    // Predicated region
    $region34: #{tpu_custom_call.1} parent=1 // pred_check
      _
    $region35: #{tpu_custom_call.1} parent=1 // pred_check_branch
      %51 = sbr.rel (0) target = $region37
    $region36: #{tpu_custom_call.1} parent=1 // pred_region
      %52 = dma.done [#allocation4], 64
    $region37: #{tpu_custom_call.1} parent=1 // pred_fallthru
      _
    // Predicated region
    $region38: #{tpu_custom_call.1} parent=1 // pred_check
      _
    $region39: #{tpu_custom_call.1} parent=1 // pred_check_branch
      %54 = sbr.rel (0) target = $region41
    $region40: #{tpu_custom_call.1} parent=1 // pred_region
      %55 = dma.done [#allocation7], 1024
    $region41: #{tpu_custom_call.1} parent=1 // pred_fallthru
      _
    %v56 = vld [vmem:[%s0] sm:$0xff]
    %v57 = vld [vmem:[%s0 + $0x8] sm:$0xff]
    %v58 = vld [vmem:[#allocation6] sm:$0xff]
    %v59 = vld [vmem:[#allocation6 + $0x8] sm:$0xff]
    %v60 = vld [vmem:[#allocation6 + $0x10] sm:$0xff]
    %v61 = vld [vmem:[#allocation6 + $0x18] sm:$0xff]
    %v62 = vld [vmem:[#allocation6 + $0x20] sm:$0x1]
    %v63 = vld [vmem:[#allocation6 + $0x28] sm:$0x1]
    %v64 = vld [vmem:[#allocation6 + $0x30] sm:$0x1]
    %v65 = vld [vmem:[#allocation6 + $0x38] sm:$0x1]
    %v68 = vcombine.high %v56, %v56
    %v69 = vcombine.high %v57, %v57
    %72 = vrot.lane.b32.xlu0 %v56, 17
    %v73 = vpop.permute.xlu0 %72
    %74 = vrot.lane.b32.xlu0 %v68, 17
    %v75 = vpop.permute.xlu0 %74
    %76 = vrot.lane.b32.xlu0 %v57, 17
    %v77 = vpop.permute.xlu0 %76
    %78 = vrot.lane.b32.xlu0 %v69, 17
    %v79 = vpop.permute.xlu0 %78
    %v80 = vlaneseq
    %v81 = vand.u32 %v80, 127
    %vm82 = vcmp.lt.s32.totalorder %v81, 17
    %v83 = vsel %vm82, %v77, %v79
    %v84 = vsel %vm82, %v75, %v77
    %v85 = vsel %vm82, %v73, %v75
    %v86 = vsel %vm82, %v79, %v73
    %v87 = vlaneseq
    %v88 = vshrl.u32 %v87, 7
    %v89 = vsub.s32 0, %v88
    %v90 = vrot.slane %v58, %v89
    %v91 = vlaneseq
    %v92 = vshrl.u32 %v91, 7
    %v93 = vsub.s32 0, %v92
    %v94 = vrot.slane %v59, %v93
    %v95 = vlaneseq
    %v96 = vshrl.u32 %v95, 7
    %v97 = vsub.s32 0, %v96
    %v98 = vrot.slane %v60, %v97
    %v99 = vlaneseq
    %v100 = vshrl.u32 %v99, 7
    %v101 = vsub.s32 0, %v100
    %v102 = vrot.slane %v61, %v101
    %v103 = vmul.f32 %v86, %v90
    %v104 = vmul.f32 %v85, %v94
    %v105 = vmul.f32 %v84, %v98
    %v106 = vmul.f32 %v83, %v102
    %107 = vst [vmem:[#allocation2] sm:$0xf] %v103
    %108 = vst [vmem:[#allocation2 + $0x8] sm:$0xf] %v104
    %109 = vst [vmem:[#allocation2 + $0x10] sm:$0xf] %v105
    %110 = vst [vmem:[#allocation2 + $0x18] sm:$0xf] %v106
    %111 = vrot.lane.b32.xlu0 %v56, 16
    %v112 = vpop.permute.xlu0 %111
    %113 = vrot.lane.b32.xlu0 %v68, 16
    %v114 = vpop.permute.xlu0 %113
    %115 = vrot.lane.b32.xlu0 %v57, 16
    %v116 = vpop.permute.xlu0 %115
    %117 = vrot.lane.b32.xlu0 %v69, 16
    %v118 = vpop.permute.xlu0 %117
    %vm119 = vcmp.lt.s32.totalorder %v81, 16
    %v120 = vsel %vm119, %v116, %v118
    %v121 = vsel %vm119, %v114, %v116
    %v122 = vsel %vm119, %v112, %v114
    %v123 = vsel %vm119, %v118, %v112
    %v124 = vlaneseq
    %v125 = vshrl.u32 %v124, 7
    %v126 = vsub.s32 1, %v125
    %v127 = vrot.slane %v58, %v126
    %v128 = vlaneseq
    %v129 = vshrl.u32 %v128, 7
    %v130 = vsub.s32 1, %v129
    %v131 = vrot.slane %v59, %v130
    %v132 = vlaneseq
    %v133 = vshrl.u32 %v132, 7
    %v134 = vsub.s32 1, %v133
    %v135 = vrot.slane %v60, %v134
    %v136 = vlaneseq
    %v137 = vshrl.u32 %v136, 7
    %v138 = vsub.s32 1, %v137
    %v139 = vrot.slane %v61, %v138
    %v140 = vmul.f32 %v123, %v127
    %v141 = vmul.f32 %v122, %v131
    %v142 = vmul.f32 %v121, %v135
    %v143 = vmul.f32 %v120, %v139
    %v148 = vrot.slane %v140, 4
    %v149 = vrot.slane %v141, 4
    %v150 = vrot.slane %v142, 4
    %v151 = vrot.slane %v143, 4
    %156 = vst [vmem:[#allocation2] sm:$0xf0] %v148
    %157 = vst [vmem:[#allocation2 + $0x8] sm:$0xf0] %v149
    %158 = vst [vmem:[#allocation2 + $0x10] sm:$0xf0] %v150
    %159 = vst [vmem:[#allocation2 + $0x18] sm:$0xf0] %v151
    %160 = vrot.lane.b32.xlu0 %v56, 15
    %v161 = vpop.permute.xlu0 %160
    %162 = vrot.lane.b32.xlu0 %v68, 15
    %v163 = vpop.permute.xlu0 %162
    %164 = vrot.lane.b32.xlu0 %v57, 15
    %v165 = vpop.permute.xlu0 %164
    %166 = vrot.lane.b32.xlu0 %v69, 15
    %v167 = vpop.permute.xlu0 %166
    %vm168 = vcmp.lt.s32.totalorder %v81, 15
    %v169 = vsel %vm168, %v165, %v167
    %v170 = vsel %vm168, %v163, %v165
    %v171 = vsel %vm168, %v161, %v163
    %v172 = vsel %vm168, %v167, %v161
    %v173 = vlaneseq
    %v174 = vshrl.u32 %v173, 7
    %v175 = vsub.s32 2, %v174
    %v176 = vrot.slane %v58, %v175
    %v177 = vlaneseq
    %v178 = vshrl.u32 %v177, 7
    %v179 = vsub.s32 2, %v178
    %v180 = vrot.slane %v59, %v179
    %v181 = vlaneseq
    %v182 = vshrl.u32 %v181, 7
    %v183 = vsub.s32 2, %v182
    %v184 = vrot.slane %v60, %v183
    %v185 = vlaneseq
    %v186 = vshrl.u32 %v185, 7
    %v187 = vsub.s32 2, %v186
    %v188 = vrot.slane %v61, %v187
    %v189 = vmul.f32 %v172, %v176
    %v190 = vmul.f32 %v171, %v180
    %v191 = vmul.f32 %v170, %v184
    %v192 = vmul.f32 %v169, %v188
    %193 = vst [vmem:[#allocation2 + $0x20] sm:$0xf] %v189
    %194 = vst [vmem:[#allocation2 + $0x28] sm:$0xf] %v190
    %195 = vst [vmem:[#allocation2 + $0x30] sm:$0xf] %v191
    %196 = vst [vmem:[#allocation2 + $0x38] sm:$0xf] %v192
    %197 = vrot.lane.b32.xlu0 %v56, 1
    %v198 = vpop.permute.xlu0 %197
    %199 = vrot.lane.b32.xlu0 %v68, 1
    %v200 = vpop.permute.xlu0 %199
    %201 = vrot.lane.b32.xlu0 %v57, 1
    %v202 = vpop.permute.xlu0 %201
    %203 = vrot.lane.b32.xlu0 %v69, 1
    %v204 = vpop.permute.xlu0 %203
    %vm205 = vcmp.lt.s32.totalorder %v81, 1
    %v206 = vsel %vm205, %v202, %v204
    %v207 = vsel %vm205, %v200, %v202
    %v208 = vsel %vm205, %v198, %v200
    %v209 = vsel %vm205, %v204, %v198
    %v210 = vlaneseq
    %v211 = vshrl.u32 %v210, 7
    %v212 = vsub.s32 3, %v211
    %v213 = vrot.slane %v58, %v212
    %v214 = vlaneseq
    %v215 = vshrl.u32 %v214, 7
    %v216 = vsub.s32 3, %v215
    %v217 = vrot.slane %v59, %v216
    %v218 = vlaneseq
    %v219 = vshrl.u32 %v218, 7
    %v220 = vsub.s32 3, %v219
    %v221 = vrot.slane %v60, %v220
    %v222 = vlaneseq
    %v223 = vshrl.u32 %v222, 7
    %v224 = vsub.s32 3, %v223
    %v225 = vrot.slane %v61, %v224
    %v226 = vmul.f32 %v209, %v213
    %v227 = vmul.f32 %v208, %v217
    %v228 = vmul.f32 %v207, %v221
    %v229 = vmul.f32 %v206, %v225
    %v234 = vrot.slane %v226, 4
    %v235 = vrot.slane %v227, 4
    %v236 = vrot.slane %v228, 4
    %v237 = vrot.slane %v229, 4
    %242 = vst [vmem:[#allocation2 + $0x20] sm:$0xf0] %v234
    %243 = vst [vmem:[#allocation2 + $0x28] sm:$0xf0] %v235
    %244 = vst [vmem:[#allocation2 + $0x30] sm:$0xf0] %v236
    %245 = vst [vmem:[#allocation2 + $0x38] sm:$0xf0] %v237
    %246 = vst [vmem:[#allocation2 + $0x40] sm:$0xf] %v56
    %247 = vst [vmem:[#allocation2 + $0x48] sm:$0xf] %v68
    %248 = vst [vmem:[#allocation2 + $0x50] sm:$0xf] %v57
    %249 = vst [vmem:[#allocation2 + $0x58] sm:$0xf] %v69
    %250 = vrot.lane.b32.xlu0 %v56, 127
    %v251 = vpop.permute.xlu0 %250
    %252 = vrot.lane.b32.xlu0 %v68, 127
    %v253 = vpop.permute.xlu0 %252
    %254 = vrot.lane.b32.xlu0 %v57, 127
    %v255 = vpop.permute.xlu0 %254
    %256 = vrot.lane.b32.xlu0 %v69, 127
    %v257 = vpop.permute.xlu0 %256
    %vm258 = vcmp.lt.s32.totalorder %v81, 127
    %v259 = vsel %vm258, %v255, %v257
    %v260 = vsel %vm258, %v253, %v255
    %v261 = vsel %vm258, %v251, %v253
    %v262 = vsel %vm258, %v257, %v251
    %v263 = vlaneseq
    %v264 = vshrl.u32 %v263, 7
    %v265 = vsub.s32 5, %v264
    %v266 = vrot.slane %v58, %v265
    %v267 = vlaneseq
    %v268 = vshrl.u32 %v267, 7
    %v269 = vsub.s32 5, %v268
    %v270 = vrot.slane %v59, %v269
    %v271 = vlaneseq
    %v272 = vshrl.u32 %v271, 7
    %v273 = vsub.s32 5, %v272
    %v274 = vrot.slane %v60, %v273
    %v275 = vlaneseq
    %v276 = vshrl.u32 %v275, 7
    %v277 = vsub.s32 5, %v276
    %v278 = vrot.slane %v61, %v277
    %v279 = vmul.f32 %v261, %v266
    %v280 = vmul.f32 %v260, %v270
    %v281 = vmul.f32 %v259, %v274
    %v282 = vmul.f32 %v262, %v278
    %v287 = vrot.slane %v279, 4
    %v288 = vrot.slane %v280, 4
    %v289 = vrot.slane %v281, 4
    %v290 = vrot.slane %v282, 4
    %295 = vst [vmem:[#allocation2 + $0x40] sm:$0xf0] %v287
    %296 = vst [vmem:[#allocation2 + $0x48] sm:$0xf0] %v288
    %297 = vst [vmem:[#allocation2 + $0x50] sm:$0xf0] %v289
    %298 = vst [vmem:[#allocation2 + $0x58] sm:$0xf0] %v290
    %299 = vrot.lane.b32.xlu0 %v56, 113
    %v300 = vpop.permute.xlu0 %299
    %301 = vrot.lane.b32.xlu0 %v68, 113
    %v302 = vpop.permute.xlu0 %301
    %303 = vrot.lane.b32.xlu0 %v57, 113
    %v304 = vpop.permute.xlu0 %303
    %305 = vrot.lane.b32.xlu0 %v69, 113
    %v306 = vpop.permute.xlu0 %305
    %vm307 = vcmp.lt.s32.totalorder %v81, 113
    %v308 = vsel %vm307, %v304, %v306
    %v309 = vsel %vm307, %v302, %v304
    %v310 = vsel %vm307, %v300, %v302
    %v311 = vsel %vm307, %v306, %v300
    %v312 = vlaneseq
    %v313 = vshrl.u32 %v312, 7
    %v314 = vsub.s32 6, %v313
    %v315 = vrot.slane %v58, %v314
    %v316 = vlaneseq
    %v317 = vshrl.u32 %v316, 7
    %v318 = vsub.s32 6, %v317
    %v319 = vrot.slane %v59, %v318
    %v320 = vlaneseq
    %v321 = vshrl.u32 %v320, 7
    %v322 = vsub.s32 6, %v321
    %v323 = vrot.slane %v60, %v322
    %v324 = vlaneseq
    %v325 = vshrl.u32 %v324, 7
    %v326 = vsub.s32 6, %v325
    %v327 = vrot.slane %v61, %v326
    %v328 = vmul.f32 %v310, %v315
    %v329 = vmul.f32 %v309, %v319
    %v330 = vmul.f32 %v308, %v323
    %v331 = vmul.f32 %v311, %v327
    %332 = vst [vmem:[#allocation2 + $0x60] sm:$0xf] %v328
    %333 = vst [vmem:[#allocation2 + $0x68] sm:$0xf] %v329
    %334 = vst [vmem:[#allocation2 + $0x70] sm:$0xf] %v330
    %335 = vst [vmem:[#allocation2 + $0x78] sm:$0xf] %v331
    %336 = vrot.lane.b32.xlu0 %v56, 112
    %v337 = vpop.permute.xlu0 %336
    %338 = vrot.lane.b32.xlu0 %v68, 112
    %v339 = vpop.permute.xlu0 %338
    %340 = vrot.lane.b32.xlu0 %v57, 112
    %v341 = vpop.permute.xlu0 %340
    %342 = vrot.lane.b32.xlu0 %v69, 112
    %v343 = vpop.permute.xlu0 %342
    %vm344 = vcmp.lt.s32.totalorder %v81, 112
    %v345 = vsel %vm344, %v341, %v343
    %v346 = vsel %vm344, %v339, %v341
    %v347 = vsel %vm344, %v337, %v339
    %v348 = vsel %vm344, %v343, %v337
    %v349 = vlaneseq
    %v350 = vshrl.u32 %v349, 7
    %v351 = vsub.s32 7, %v350
    %v352 = vrot.slane %v58, %v351
    %v353 = vlaneseq
    %v354 = vshrl.u32 %v353, 7
    %v355 = vsub.s32 7, %v354
    %v356 = vrot.slane %v59, %v355
    %v357 = vlaneseq
    %v358 = vshrl.u32 %v357, 7
    %v359 = vsub.s32 7, %v358
    %v360 = vrot.slane %v60, %v359
    %v361 = vlaneseq
    %v362 = vshrl.u32 %v361, 7
    %v363 = vsub.s32 7, %v362
    %v364 = vrot.slane %v61, %v363
    %v365 = vmul.f32 %v347, %v352
    %v366 = vmul.f32 %v346, %v356
    %v367 = vmul.f32 %v345, %v360
    %v368 = vmul.f32 %v348, %v364
    %v373 = vrot.slane %v365, 4
    %v374 = vrot.slane %v366, 4
    %v375 = vrot.slane %v367, 4
    %v376 = vrot.slane %v368, 4
    %381 = vst [vmem:[#allocation2 + $0x60] sm:$0xf0] %v373
    %382 = vst [vmem:[#allocation2 + $0x68] sm:$0xf0] %v374
    %383 = vst [vmem:[#allocation2 + $0x70] sm:$0xf0] %v375
    %384 = vst [vmem:[#allocation2 + $0x78] sm:$0xf0] %v376
    %385 = vrot.lane.b32.xlu0 %v56, 111
    %v386 = vpop.permute.xlu0 %385
    %387 = vrot.lane.b32.xlu0 %v68, 111
    %v388 = vpop.permute.xlu0 %387
    %389 = vrot.lane.b32.xlu0 %v57, 111
    %v390 = vpop.permute.xlu0 %389
    %391 = vrot.lane.b32.xlu0 %v69, 111
    %v392 = vpop.permute.xlu0 %391
    %vm393 = vcmp.lt.s32.totalorder %v81, 111
    %v394 = vsel %vm393, %v390, %v392
    %v395 = vsel %vm393, %v388, %v390
    %v396 = vsel %vm393, %v386, %v388
    %v397 = vsel %vm393, %v392, %v386
    %v398 = vlaneseq
    %v399 = vshrl.u32 %v398, 7
    %v400 = vsub.s32 0, %v399
    %v401 = vrot.slane %v62, %v400
    %v402 = vlaneseq
    %v403 = vshrl.u32 %v402, 7
    %v404 = vsub.s32 0, %v403
    %v405 = vrot.slane %v63, %v404
    %v406 = vlaneseq
    %v407 = vshrl.u32 %v406, 7
    %v408 = vsub.s32 0, %v407
    %v409 = vrot.slane %v64, %v408
    %v410 = vlaneseq
    %v411 = vshrl.u32 %v410, 7
    %v412 = vsub.s32 0, %v411
    %v413 = vrot.slane %v65, %v412
    %v414 = vmul.f32 %v396, %v401
    %v415 = vmul.f32 %v395, %v405
    %v416 = vmul.f32 %v394, %v409
    %v417 = vmul.f32 %v397, %v413
    %418 = vst [vmem:[#allocation2 + $0x80] sm:$0xf] %v414
    %419 = vst [vmem:[#allocation2 + $0x88] sm:$0xf] %v415
    %420 = vst [vmem:[#allocation2 + $0x90] sm:$0xf] %v416
    %421 = vst [vmem:[#allocation2 + $0x98] sm:$0xf] %v417
    %v422 = vld [vmem:[%s1] sm:$0xf]
    %v423 = vld [vmem:[#allocation2] sm:$0xff]
    %v424 = vld [vmem:[#allocation2 + $0x8] sm:$0xff]
    %v425 = vld [vmem:[#allocation2 + $0x10] sm:$0xff]
    %v426 = vld [vmem:[#allocation2 + $0x18] sm:$0xff]
    %v427 = vld [vmem:[#allocation2 + $0x20] sm:$0xff]
    %v428 = vld [vmem:[#allocation2 + $0x28] sm:$0xff]
    %v429 = vld [vmem:[#allocation2 + $0x30] sm:$0xff]
    %v430 = vld [vmem:[#allocation2 + $0x38] sm:$0xff]
    %v431 = vld [vmem:[#allocation2 + $0x40] sm:$0xff]
    %v432 = vld [vmem:[#allocation2 + $0x48] sm:$0xff]
    %v433 = vld [vmem:[#allocation2 + $0x50] sm:$0xff]
    %v434 = vld [vmem:[#allocation2 + $0x58] sm:$0xff]
    %v435 = vld [vmem:[#allocation2 + $0x60] sm:$0xff]
    %v436 = vld [vmem:[#allocation2 + $0x68] sm:$0xff]
    %v437 = vld [vmem:[#allocation2 + $0x70] sm:$0xff]
    %v438 = vld [vmem:[#allocation2 + $0x78] sm:$0xff]
    %v439 = vld [vmem:[#allocation2 + $0x80] sm:$0xf]
    %v440 = vld [vmem:[#allocation2 + $0x88] sm:$0xf]
    %v441 = vld [vmem:[#allocation2 + $0x90] sm:$0xf]
    %v442 = vld [vmem:[#allocation2 + $0x98] sm:$0xf]
    %vm443 = vcmask 293888
    %v445 = vsel %vm443, %v422, 0
    %vm447 = vcmask 1043456
    %v449 = vsel %vm447, %v439, 0
    %v452 = vsel %vm447, %v440, 0
    %v455 = vsel %vm447, %v441, 0
    %v458 = vsel %vm447, %v442, 0
    %460 = vmatprep.subr.mxu0 0.0
    %461 = vmatpush1.msra.mxu0 0.0
    %462 = vmatprep.subr.mxu0 0.0
    %463 = vmatpush1.msra.mxu0 0.0
    %464 = vmatprep.subr.mxu0 0.0
    %465 = vmatpush1.msra.mxu0 0.0
    %466 = vmatprep.subr.mxu0 0.0
    %467 = vmatpush1.msra.mxu0 0.0
    %468 = vmatprep.subr.mxu0 0.0
    %469 = vmatpush1.msra.mxu0 0.0
    %470 = vmatprep.subr.mxu0 0.0
    %471 = vmatpush1.msra.mxu0 0.0
    %472 = vmatprep.subr.mxu0 0.0
    %473 = vmatpush1.msra.mxu0 0.0
    %474 = vmatprep.subr.mxu0 0.0
    %475 = vmatpush1.msra.mxu0 0.0
    %476 = vmatprep.subr.mxu0 0.0
    %477 = vmatpush1.msra.mxu0 0.0
    %478 = vmatprep.subr.mxu0 0.0
    %479 = vmatpush1.msra.mxu0 0.0
    %480 = vmatprep.subr.mxu0 0.0
    %481 = vmatpush1.msra.mxu0 0.0
    %482 = vmatprep.subr.mxu0 %v452
    %483 = vmatpush1.msra.mxu0 %v449
    %484 = vmatprep.subr.mxu0 %v436
    %485 = vmatpush1.msra.mxu0 %v435
    %486 = vmatprep.subr.mxu0 %v432
    %487 = vmatpush1.msra.mxu0 %v431
    %488 = vmatprep.subr.mxu0 %v428
    %489 = vmatpush1.msra.mxu0 %v427
    %490 = vmatprep.subr.mxu0 %v424
    %491 = vmatpush1.msra.mxu0 %v423
    %492 = vmatprep.subr.mxu0 0.0
    %493 = vmatpush2.msra.mxu0 0.0
    %494 = vmatprep.subr.mxu0 0.0
    %495 = vmatpush2.msra.mxu0 0.0
    %496 = vmatprep.subr.mxu0 0.0
    %497 = vmatpush2.msra.mxu0 0.0
    %498 = vmatprep.subr.mxu0 0.0
    %499 = vmatpush2.msra.mxu0 0.0
    %500 = vmatprep.subr.mxu0 0.0
    %501 = vmatpush2.msra.mxu0 0.0
    %502 = vmatprep.subr.mxu0 0.0
    %503 = vmatpush2.msra.mxu0 0.0
    %504 = vmatprep.subr.mxu0 0.0
    %505 = vmatpush2.msra.mxu0 0.0
    %506 = vmatprep.subr.mxu0 0.0
    %507 = vmatpush2.msra.mxu0 0.0
    %508 = vmatprep.subr.mxu0 0.0
    %509 = vmatpush2.msra.mxu0 0.0
    %510 = vmatprep.subr.mxu0 0.0
    %511 = vmatpush2.msra.mxu0 0.0
    %512 = vmatprep.subr.mxu0 0.0
    %513 = vmatpush2.msra.mxu0 0.0
    %514 = vmatprep.subr.mxu0 0.0
    %515 = vmatpush2.msra.mxu0 0.0
    %516 = vmatprep.subr.mxu0 0.0
    %517 = vmatpush2.msra.mxu0 0.0
    %518 = vmatprep.subr.mxu0 0.0
    %519 = vmatpush2.msra.mxu0 0.0
    %520 = vmatprep.subr.mxu0 0.0
    %521 = vmatpush2.msra.mxu0 0.0
    %522 = vmatprep.subr.mxu0 0.0
    %523 = vmatpush2.msra.mxu0 0.0
    %524 = vmatprep.mubr.f32.mxu0 0.0
    %525 = vmatmul.mubr.f32.gmra.mxu0 %v445
    %v526 = vpop.f32.mrf.mxu0
    %v527 = vadd.f32 0.0, %v526
    %v528 = vpop.f32.mrf.mxu0
    %v529 = vadd.f32 0.0, %v528
    %530 = vdwg.mxu0
    %531 = vmatprep.subr.mxu0 0.0
    %532 = vmatpush1.msra.mxu0 0.0
    %533 = vmatprep.subr.mxu0 0.0
    %534 = vmatpush1.msra.mxu0 0.0
    %535 = vmatprep.subr.mxu0 0.0
    %536 = vmatpush1.msra.mxu0 0.0
    %537 = vmatprep.subr.mxu0 0.0
    %538 = vmatpush1.msra.mxu0 0.0
    %539 = vmatprep.subr.mxu0 0.0
    %540 = vmatpush1.msra.mxu0 0.0
    %541 = vmatprep.subr.mxu0 0.0
    %542 = vmatpush1.msra.mxu0 0.0
    %543 = vmatprep.subr.mxu0 0.0
    %544 = vmatpush1.msra.mxu0 0.0
    %545 = vmatprep.subr.mxu0 0.0
    %546 = vmatpush1.msra.mxu0 0.0
    %547 = vmatprep.subr.mxu0 0.0
    %548 = vmatpush1.msra.mxu0 0.0
    %549 = vmatprep.subr.mxu0 0.0
    %550 = vmatpush1.msra.mxu0 0.0
    %551 = vmatprep.subr.mxu0 0.0
    %552 = vmatpush1.msra.mxu0 0.0
    %553 = vmatprep.subr.mxu0 %v458
    %554 = vmatpush1.msra.mxu0 %v455
    %555 = vmatprep.subr.mxu0 %v438
    %556 = vmatpush1.msra.mxu0 %v437
    %557 = vmatprep.subr.mxu0 %v434
    %558 = vmatpush1.msra.mxu0 %v433
    %559 = vmatprep.subr.mxu0 %v430
    %560 = vmatpush1.msra.mxu0 %v429
    %561 = vmatprep.subr.mxu0 %v426
    %562 = vmatpush1.msra.mxu0 %v425
    %563 = vmatprep.subr.mxu0 0.0
    %564 = vmatpush2.msra.mxu0 0.0
    %565 = vmatprep.subr.mxu0 0.0
    %566 = vmatpush2.msra.mxu0 0.0
    %567 = vmatprep.subr.mxu0 0.0
    %568 = vmatpush2.msra.mxu0 0.0
    %569 = vmatprep.subr.mxu0 0.0
    %570 = vmatpush2.msra.mxu0 0.0
    %571 = vmatprep.subr.mxu0 0.0
    %572 = vmatpush2.msra.mxu0 0.0
    %573 = vmatprep.subr.mxu0 0.0
    %574 = vmatpush2.msra.mxu0 0.0
    %575 = vmatprep.subr.mxu0 0.0
    %576 = vmatpush2.msra.mxu0 0.0
    %577 = vmatprep.subr.mxu0 0.0
    %578 = vmatpush2.msra.mxu0 0.0
    %579 = vmatprep.subr.mxu0 0.0
    %580 = vmatpush2.msra.mxu0 0.0
    %581 = vmatprep.subr.mxu0 0.0
    %582 = vmatpush2.msra.mxu0 0.0
    %583 = vmatprep.subr.mxu0 0.0
    %584 = vmatpush2.msra.mxu0 0.0
    %585 = vmatprep.subr.mxu0 0.0
    %586 = vmatpush2.msra.mxu0 0.0
    %587 = vmatprep.subr.mxu0 0.0
    %588 = vmatpush2.msra.mxu0 0.0
    %589 = vmatprep.subr.mxu0 0.0
    %590 = vmatpush2.msra.mxu0 0.0
    %591 = vmatprep.subr.mxu0 0.0
    %592 = vmatpush2.msra.mxu0 0.0
    %593 = vmatprep.subr.mxu0 0.0
    %594 = vmatpush2.msra.mxu0 0.0
    %595 = vmatprep.mubr.f32.mxu0 0.0
    %596 = vmatmul.mubr.f32.gmra.mxu0 %v445
    %v597 = vpop.f32.mrf.mxu0
    %v598 = vadd.f32 0.0, %v597
    %v599 = vpop.f32.mrf.mxu0
    %v600 = vadd.f32 0.0, %v599
    %601 = vdwg.mxu0
    %v602 = vsel %vm447, %v527, 0.0
    %v603 = vsel %vm447, %v529, 0.0
    %v604 = vadd.f32 %v602, %v603
    %v605 = vsel %vm447, %v598, 0.0
    %v606 = vadd.f32 %v604, %v605
    %v607 = vsel %vm447, %v600, 0.0
    %v608 = vadd.f32 %v606, %v607
    %609 = vadd.xlane.f32.xlu0 %v608
    %v610 = vpop.xlane.xlu0 %609
    %v611 = vmul.f32 %v610, 0.001953125
    %v612 = vmul.f32 %v527, %v527
    %v613 = vmul.f32 %v529, %v529
    %v614 = vmul.f32 %v598, %v598
    %v615 = vmul.f32 %v600, %v600
    %v616 = vsel %vm447, %v612, 0.0
    %v617 = vsel %vm447, %v613, 0.0
    %v618 = vadd.f32 %v616, %v617
    %v619 = vsel %vm447, %v614, 0.0
    %v620 = vadd.f32 %v618, %v619
    %v621 = vsel %vm447, %v615, 0.0
    %v622 = vadd.f32 %v620, %v621
    %623 = vadd.xlane.f32.xlu0 %v622
    %v624 = vpop.xlane.xlu0 %623
    %v625 = vmul.f32 %v624, 0.001953125
    %v626 = vmul.f32 %v611, %v611
    %v627 = vsub.f32 %v625, %v626
    %v628 = vmax.f32 %v627, 0.0
    %v629 = vld [vmem:[%s3] sm:$0xf]
    %v630 = vadd.f32 %v628, 1e-05
    %v631 = vrsqrt.pop %v630
    %v632 = vmul.f32 %v629, %v631
    %v633 = vld [vmem:[%s4] sm:$0xf]
    %v634 = vmul.f32 %v611, %v632
    %v635 = vsub.f32 %v633, %v634
    %637 = vset.pattern.permute.xlu0 0
    %638 = vperm.xlu0 %637, %v632
    %v639 = vpop.permute.xlu0 %638
    %v641 = vmul.f32 %v527, %v639
    %v642 = vmul.f32 %v529, %v639
    %v643 = vmul.f32 %v598, %v639
    %v644 = vmul.f32 %v600, %v639
    %646 = vset.pattern.permute.xlu0 0
    %647 = vperm.xlu0 %646, %v635
    %v648 = vpop.permute.xlu0 %647
    %v650 = vadd.f32 %v641, %v648
    %v651 = vadd.f32 %v642, %v648
    %v652 = vadd.f32 %v643, %v648
    %v653 = vadd.f32 %v644, %v648
    %vm654 = vcmp.ge.f32.partialorder %v650, 0.0
    %vm655 = vcmp.ge.f32.partialorder %v651, 0.0
    %vm656 = vcmp.ge.f32.partialorder %v652, 0.0
    %vm657 = vcmp.ge.f32.partialorder %v653, 0.0
    %v658 = vmul.f32 %v650, 0.2
    %v659 = vmul.f32 %v651, 0.2
    %v660 = vmul.f32 %v652, 0.2
    %v661 = vmul.f32 %v653, 0.2
    %v662 = vsel %vm654, %v650, %v658
    %v663 = vsel %vm655, %v651, %v659
    %v664 = vsel %vm656, %v652, %v660
    %v665 = vsel %vm657, %v653, %v661
    %666 = vrot.lane.b32.xlu0 %v662, 17
    %v667 = vpop.permute.xlu0 %666
    %668 = vrot.lane.b32.xlu0 %v663, 17
    %v669 = vpop.permute.xlu0 %668
    %670 = vrot.lane.b32.xlu0 %v664, 17
    %v671 = vpop.permute.xlu0 %670
    %672 = vrot.lane.b32.xlu0 %v665, 17
    %v673 = vpop.permute.xlu0 %672
    %v674 = vsel %vm82, %v671, %v673
    %v675 = vsel %vm82, %v669, %v671
    %v676 = vsel %vm82, %v667, %v669
    %v677 = vsel %vm82, %v673, %v667
    %v678 = vmul.f32 %v677, %v90
    %v679 = vmul.f32 %v676, %v94
    %v680 = vmul.f32 %v675, %v98
    %v681 = vmul.f32 %v674, %v102
    %682 = vst [vmem:[#allocation2] sm:$0xf] %v678
    %683 = vst [vmem:[#allocation2 + $0x8] sm:$0xf] %v679
    %684 = vst [vmem:[#allocation2 + $0x10] sm:$0xf] %v680
    %685 = vst [vmem:[#allocation2 + $0x18] sm:$0xf] %v681
    %686 = vrot.lane.b32.xlu0 %v662, 16
    %v687 = vpop.permute.xlu0 %686
    %688 = vrot.lane.b32.xlu0 %v663, 16
    %v689 = vpop.permute.xlu0 %688
    %690 = vrot.lane.b32.xlu0 %v664, 16
    %v691 = vpop.permute.xlu0 %690
    %692 = vrot.lane.b32.xlu0 %v665, 16
    %v693 = vpop.permute.xlu0 %692
    %v694 = vsel %vm119, %v691, %v693
    %v695 = vsel %vm119, %v689, %v691
    %v696 = vsel %vm119, %v687, %v689
    %v697 = vsel %vm119, %v693, %v687
    %v698 = vmul.f32 %v697, %v127
    %v699 = vmul.f32 %v696, %v131
    %v700 = vmul.f32 %v695, %v135
    %v701 = vmul.f32 %v694, %v139
    %v706 = vrot.slane %v698, 4
    %v707 = vrot.slane %v699, 4
    %v708 = vrot.slane %v700, 4
    %v709 = vrot.slane %v701, 4
    %714 = vst [vmem:[#allocation2] sm:$0xf0] %v706
    %715 = vst [vmem:[#allocation2 + $0x8] sm:$0xf0] %v707
    %716 = vst [vmem:[#allocation2 + $0x10] sm:$0xf0] %v708
    %717 = vst [vmem:[#allocation2 + $0x18] sm:$0xf0] %v709
    %718 = vrot.lane.b32.xlu0 %v662, 15
    %v719 = vpop.permute.xlu0 %718
    %720 = vrot.lane.b32.xlu0 %v663, 15
    %v721 = vpop.permute.xlu0 %720
    %722 = vrot.lane.b32.xlu0 %v664, 15
    %v723 = vpop.permute.xlu0 %722
    %724 = vrot.lane.b32.xlu0 %v665, 15
    %v725 = vpop.permute.xlu0 %724
    %v726 = vsel %vm168, %v723, %v725
    %v727 = vsel %vm168, %v721, %v723
    %v728 = vsel %vm168, %v719, %v721
    %v729 = vsel %vm168, %v725, %v719
    %v730 = vmul.f32 %v729, %v176
    %v731 = vmul.f32 %v728, %v180
    %v732 = vmul.f32 %v727, %v184
    %v733 = vmul.f32 %v726, %v188
    %734 = vst [vmem:[#allocation2 + $0x20] sm:$0xf] %v730
    %735 = vst [vmem:[#allocation2 + $0x28] sm:$0xf] %v731
    %736 = vst [vmem:[#allocation2 + $0x30] sm:$0xf] %v732
    %737 = vst [vmem:[#allocation2 + $0x38] sm:$0xf] %v733
    %738 = vrot.lane.b32.xlu0 %v662, 1
    %v739 = vpop.permute.xlu0 %738
    %740 = vrot.lane.b32.xlu0 %v663, 1
    %v741 = vpop.permute.xlu0 %740
    %742 = vrot.lane.b32.xlu0 %v664, 1
    %v743 = vpop.permute.xlu0 %742
    %744 = vrot.lane.b32.xlu0 %v665, 1
    %v745 = vpop.permute.xlu0 %744
    %v746 = vsel %vm205, %v743, %v745
    %v747 = vsel %vm205, %v741, %v743
    %v748 = vsel %vm205, %v739, %v741
    %v749 = vsel %vm205, %v745, %v739
    %v750 = vmul.f32 %v749, %v213
    %v751 = vmul.f32 %v748, %v217
    %v752 = vmul.f32 %v747, %v221
    %v753 = vmul.f32 %v746, %v225
    %v758 = vrot.slane %v750, 4
    %v759 = vrot.slane %v751, 4
    %v760 = vrot.slane %v752, 4
    %v761 = vrot.slane %v753, 4
    %766 = vst [vmem:[#allocation2 + $0x20] sm:$0xf0] %v758
    %767 = vst [vmem:[#allocation2 + $0x28] sm:$0xf0] %v759
    %768 = vst [vmem:[#allocation2 + $0x30] sm:$0xf0] %v760
    %769 = vst [vmem:[#allocation2 + $0x38] sm:$0xf0] %v761
    %770 = vst [vmem:[#allocation2 + $0x40] sm:$0xf] %v662
    %771 = vst [vmem:[#allocation2 + $0x48] sm:$0xf] %v663
    %772 = vst [vmem:[#allocation2 + $0x50] sm:$0xf] %v664
    %773 = vst [vmem:[#allocation2 + $0x58] sm:$0xf] %v665
    %774 = vrot.lane.b32.xlu0 %v662, 127
    %v775 = vpop.permute.xlu0 %774
    %776 = vrot.lane.b32.xlu0 %v663, 127
    %v777 = vpop.permute.xlu0 %776
    %778 = vrot.lane.b32.xlu0 %v664, 127
    %v779 = vpop.permute.xlu0 %778
    %780 = vrot.lane.b32.xlu0 %v665, 127
    %v781 = vpop.permute.xlu0 %780
    %v782 = vsel %vm258, %v779, %v781
    %v783 = vsel %vm258, %v777, %v779
    %v784 = vsel %vm258, %v775, %v777
    %v785 = vsel %vm258, %v781, %v775
    %v786 = vmul.f32 %v784, %v266
    %v787 = vmul.f32 %v783, %v270
    %v788 = vmul.f32 %v782, %v274
    %v789 = vmul.f32 %v785, %v278
    %v794 = vrot.slane %v786, 4
    %v795 = vrot.slane %v787, 4
    %v796 = vrot.slane %v788, 4
    %v797 = vrot.slane %v789, 4
    %802 = vst [vmem:[#allocation2 + $0x40] sm:$0xf0] %v794
    %803 = vst [vmem:[#allocation2 + $0x48] sm:$0xf0] %v795
    %804 = vst [vmem:[#allocation2 + $0x50] sm:$0xf0] %v796
    %805 = vst [vmem:[#allocation2 + $0x58] sm:$0xf0] %v797
    %806 = vrot.lane.b32.xlu0 %v662, 113
    %v807 = vpop.permute.xlu0 %806
    %808 = vrot.lane.b32.xlu0 %v663, 113
    %v809 = vpop.permute.xlu0 %808
    %810 = vrot.lane.b32.xlu0 %v664, 113
    %v811 = vpop.permute.xlu0 %810
    %812 = vrot.lane.b32.xlu0 %v665, 113
    %v813 = vpop.permute.xlu0 %812
    %v814 = vsel %vm307, %v811, %v813
    %v815 = vsel %vm307, %v809, %v811
    %v816 = vsel %vm307, %v807, %v809
    %v817 = vsel %vm307, %v813, %v807
    %v818 = vmul.f32 %v816, %v315
    %v819 = vmul.f32 %v815, %v319
    %v820 = vmul.f32 %v814, %v323
    %v821 = vmul.f32 %v817, %v327
    %822 = vst [vmem:[#allocation2 + $0x60] sm:$0xf] %v818
    %823 = vst [vmem:[#allocation2 + $0x68] sm:$0xf] %v819
    %824 = vst [vmem:[#allocation2 + $0x70] sm:$0xf] %v820
    %825 = vst [vmem:[#allocation2 + $0x78] sm:$0xf] %v821
    %826 = vrot.lane.b32.xlu0 %v662, 112
    %v827 = vpop.permute.xlu0 %826
    %828 = vrot.lane.b32.xlu0 %v663, 112
    %v829 = vpop.permute.xlu0 %828
    %830 = vrot.lane.b32.xlu0 %v664, 112
    %v831 = vpop.permute.xlu0 %830
    %832 = vrot.lane.b32.xlu0 %v665, 112
    %v833 = vpop.permute.xlu0 %832
    %v834 = vsel %vm344, %v831, %v833
    %v835 = vsel %vm344, %v829, %v831
    %v836 = vsel %vm344, %v827, %v829
    %v837 = vsel %vm344, %v833, %v827
    %v838 = vmul.f32 %v836, %v352
    %v839 = vmul.f32 %v835, %v356
    %v840 = vmul.f32 %v834, %v360
    %v841 = vmul.f32 %v837, %v364
    %v846 = vrot.slane %v838, 4
    %v847 = vrot.slane %v839, 4
    %v848 = vrot.slane %v840, 4
    %v849 = vrot.slane %v841, 4
    %854 = vst [vmem:[#allocation2 + $0x60] sm:$0xf0] %v846
    %855 = vst [vmem:[#allocation2 + $0x68] sm:$0xf0] %v847
    %856 = vst [vmem:[#allocation2 + $0x70] sm:$0xf0] %v848
    %857 = vst [vmem:[#allocation2 + $0x78] sm:$0xf0] %v849
    %858 = vrot.lane.b32.xlu0 %v662, 111
    %v859 = vpop.permute.xlu0 %858
    %860 = vrot.lane.b32.xlu0 %v663, 111
    %v861 = vpop.permute.xlu0 %860
    %862 = vrot.lane.b32.xlu0 %v664, 111
    %v863 = vpop.permute.xlu0 %862
    %864 = vrot.lane.b32.xlu0 %v665, 111
    %v865 = vpop.permute.xlu0 %864
    %v866 = vsel %vm393, %v863, %v865
    %v867 = vsel %vm393, %v861, %v863
    %v868 = vsel %vm393, %v859, %v861
    %v869 = vsel %vm393, %v865, %v859
    %v870 = vmul.f32 %v868, %v401
    %v871 = vmul.f32 %v867, %v405
    %v872 = vmul.f32 %v866, %v409
    %v873 = vmul.f32 %v869, %v413
    %874 = vst [vmem:[#allocation2 + $0x80] sm:$0xf] %v870
    %875 = vst [vmem:[#allocation2 + $0x88] sm:$0xf] %v871
    %876 = vst [vmem:[#allocation2 + $0x90] sm:$0xf] %v872
    %877 = vst [vmem:[#allocation2 + $0x98] sm:$0xf] %v873
    %v878 = vld [vmem:[#allocation3] sm:$0xf]
    %v879 = vld [vmem:[#allocation2] sm:$0xff]
    %v880 = vld [vmem:[#allocation2 + $0x8] sm:$0xff]
    %v881 = vld [vmem:[#allocation2 + $0x10] sm:$0xff]
    %v882 = vld [vmem:[#allocation2 + $0x18] sm:$0xff]
    %v883 = vld [vmem:[#allocation2 + $0x20] sm:$0xff]
    %v884 = vld [vmem:[#allocation2 + $0x28] sm:$0xff]
    %v885 = vld [vmem:[#allocation2 + $0x30] sm:$0xff]
    %v886 = vld [vmem:[#allocation2 + $0x38] sm:$0xff]
    %v887 = vld [vmem:[#allocation2 + $0x40] sm:$0xff]
    %v888 = vld [vmem:[#allocation2 + $0x48] sm:$0xff]
    %v889 = vld [vmem:[#allocation2 + $0x50] sm:$0xff]
    %v890 = vld [vmem:[#allocation2 + $0x58] sm:$0xff]
    %v891 = vld [vmem:[#allocation2 + $0x60] sm:$0xff]
    %v892 = vld [vmem:[#allocation2 + $0x68] sm:$0xff]
    %v893 = vld [vmem:[#allocation2 + $0x70] sm:$0xff]
    %v894 = vld [vmem:[#allocation2 + $0x78] sm:$0xff]
    %v895 = vld [vmem:[#allocation2 + $0x80] sm:$0xf]
    %v896 = vld [vmem:[#allocation2 + $0x88] sm:$0xf]
    %v897 = vld [vmem:[#allocation2 + $0x90] sm:$0xf]
    %v898 = vld [vmem:[#allocation2 + $0x98] sm:$0xf]
    %v900 = vsel %vm443, %v878, 0
    %v903 = vsel %vm447, %v895, 0
    %v906 = vsel %vm447, %v896, 0
    %v909 = vsel %vm447, %v897, 0
    %v912 = vsel %vm447, %v898, 0
    %914 = vmatprep.subr.mxu0 0.0
    %915 = vmatpush1.msra.mxu0 0.0
    %916 = vmatprep.subr.mxu0 0.0
    %917 = vmatpush1.msra.mxu0 0.0
    %918 = vmatprep.subr.mxu0 0.0
    %919 = vmatpush1.msra.mxu0 0.0
    %920 = vmatprep.subr.mxu0 0.0
    %921 = vmatpush1.msra.mxu0 0.0
    %922 = vmatprep.subr.mxu0 0.0
    %923 = vmatpush1.msra.mxu0 0.0
    %924 = vmatprep.subr.mxu0 0.0
    %925 = vmatpush1.msra.mxu0 0.0
    %926 = vmatprep.subr.mxu0 0.0
    %927 = vmatpush1.msra.mxu0 0.0
    %928 = vmatprep.subr.mxu0 0.0
    %929 = vmatpush1.msra.mxu0 0.0
    %930 = vmatprep.subr.mxu0 0.0
    %931 = vmatpush1.msra.mxu0 0.0
    %932 = vmatprep.subr.mxu0 0.0
    %933 = vmatpush1.msra.mxu0 0.0
    %934 = vmatprep.subr.mxu0 0.0
    %935 = vmatpush1.msra.mxu0 0.0
    %936 = vmatprep.subr.mxu0 %v906
    %937 = vmatpush1.msra.mxu0 %v903
    %938 = vmatprep.subr.mxu0 %v892
    %939 = vmatpush1.msra.mxu0 %v891
    %940 = vmatprep.subr.mxu0 %v888
    %941 = vmatpush1.msra.mxu0 %v887
    %942 = vmatprep.subr.mxu0 %v884
    %943 = vmatpush1.msra.mxu0 %v883
    %944 = vmatprep.subr.mxu0 %v880
    %945 = vmatpush1.msra.mxu0 %v879
    %946 = vmatprep.subr.mxu0 0.0
    %947 = vmatpush2.msra.mxu0 0.0
    %948 = vmatprep.subr.mxu0 0.0
    %949 = vmatpush2.msra.mxu0 0.0
    %950 = vmatprep.subr.mxu0 0.0
    %951 = vmatpush2.msra.mxu0 0.0
    %952 = vmatprep.subr.mxu0 0.0
    %953 = vmatpush2.msra.mxu0 0.0
    %954 = vmatprep.subr.mxu0 0.0
    %955 = vmatpush2.msra.mxu0 0.0
    %956 = vmatprep.subr.mxu0 0.0
    %957 = vmatpush2.msra.mxu0 0.0
    %958 = vmatprep.subr.mxu0 0.0
    %959 = vmatpush2.msra.mxu0 0.0
    %960 = vmatprep.subr.mxu0 0.0
    %961 = vmatpush2.msra.mxu0 0.0
    %962 = vmatprep.subr.mxu0 0.0
    %963 = vmatpush2.msra.mxu0 0.0
    %964 = vmatprep.subr.mxu0 0.0
    %965 = vmatpush2.msra.mxu0 0.0
    %966 = vmatprep.subr.mxu0 0.0
    %967 = vmatpush2.msra.mxu0 0.0
    %968 = vmatprep.subr.mxu0 0.0
    %969 = vmatpush2.msra.mxu0 0.0
    %970 = vmatprep.subr.mxu0 0.0
    %971 = vmatpush2.msra.mxu0 0.0
    %972 = vmatprep.subr.mxu0 0.0
    %973 = vmatpush2.msra.mxu0 0.0
    %974 = vmatprep.subr.mxu0 0.0
    %975 = vmatpush2.msra.mxu0 0.0
    %976 = vmatprep.subr.mxu0 0.0
    %977 = vmatpush2.msra.mxu0 0.0
    %978 = vmatprep.mubr.f32.mxu0 0.0
    %979 = vmatmul.mubr.f32.gmra.mxu0 %v900
    %v980 = vpop.f32.mrf.mxu0
    %v981 = vadd.f32 0.0, %v980
    %v982 = vpop.f32.mrf.mxu0
    %v983 = vadd.f32 0.0, %v982
    %984 = vdwg.mxu0
    %985 = vmatprep.subr.mxu0 0.0
    %986 = vmatpush1.msra.mxu0 0.0
    %987 = vmatprep.subr.mxu0 0.0
    %988 = vmatpush1.msra.mxu0 0.0
    %989 = vmatprep.subr.mxu0 0.0
    %990 = vmatpush1.msra.mxu0 0.0
    %991 = vmatprep.subr.mxu0 0.0
    %992 = vmatpush1.msra.mxu0 0.0
    %993 = vmatprep.subr.mxu0 0.0
    %994 = vmatpush1.msra.mxu0 0.0
    %995 = vmatprep.subr.mxu0 0.0
    %996 = vmatpush1.msra.mxu0 0.0
    %997 = vmatprep.subr.mxu0 0.0
    %998 = vmatpush1.msra.mxu0 0.0
    %999 = vmatprep.subr.mxu0 0.0
    %1000 = vmatpush1.msra.mxu0 0.0
    %1001 = vmatprep.subr.mxu0 0.0
    %1002 = vmatpush1.msra.mxu0 0.0
    %1003 = vmatprep.subr.mxu0 0.0
    %1004 = vmatpush1.msra.mxu0 0.0
    %1005 = vmatprep.subr.mxu0 0.0
    %1006 = vmatpush1.msra.mxu0 0.0
    %1007 = vmatprep.subr.mxu0 %v912
    %1008 = vmatpush1.msra.mxu0 %v909
    %1009 = vmatprep.subr.mxu0 %v894
    %1010 = vmatpush1.msra.mxu0 %v893
    %1011 = vmatprep.subr.mxu0 %v890
    %1012 = vmatpush1.msra.mxu0 %v889
    %1013 = vmatprep.subr.mxu0 %v886
    %1014 = vmatpush1.msra.mxu0 %v885
    %1015 = vmatprep.subr.mxu0 %v882
    %1016 = vmatpush1.msra.mxu0 %v881
    %1017 = vmatprep.subr.mxu0 0.0
    %1018 = vmatpush2.msra.mxu0 0.0
    %1019 = vmatprep.subr.mxu0 0.0
    %1020 = vmatpush2.msra.mxu0 0.0
    %1021 = vmatprep.subr.mxu0 0.0
    %1022 = vmatpush2.msra.mxu0 0.0
    %1023 = vmatprep.subr.mxu0 0.0
    %1024 = vmatpush2.msra.mxu0 0.0
    %1025 = vmatprep.subr.mxu0 0.0
    %1026 = vmatpush2.msra.mxu0 0.0
    %1027 = vmatprep.subr.mxu0 0.0
    %1028 = vmatpush2.msra.mxu0 0.0
    %1029 = vmatprep.subr.mxu0 0.0
    %1030 = vmatpush2.msra.mxu0 0.0
    %1031 = vmatprep.subr.mxu0 0.0
    %1032 = vmatpush2.msra.mxu0 0.0
    %1033 = vmatprep.subr.mxu0 0.0
    %1034 = vmatpush2.msra.mxu0 0.0
    %1035 = vmatprep.subr.mxu0 0.0
    %1036 = vmatpush2.msra.mxu0 0.0
    %1037 = vmatprep.subr.mxu0 0.0
    %1038 = vmatpush2.msra.mxu0 0.0
    %1039 = vmatprep.subr.mxu0 0.0
    %1040 = vmatpush2.msra.mxu0 0.0
    %1041 = vmatprep.subr.mxu0 0.0
    %1042 = vmatpush2.msra.mxu0 0.0
    %1043 = vmatprep.subr.mxu0 0.0
    %1044 = vmatpush2.msra.mxu0 0.0
    %1045 = vmatprep.subr.mxu0 0.0
    %1046 = vmatpush2.msra.mxu0 0.0
    %1047 = vmatprep.subr.mxu0 0.0
    %1048 = vmatpush2.msra.mxu0 0.0
    %1049 = vmatprep.mubr.f32.mxu0 0.0
    %1050 = vmatmul.mubr.f32.gmra.mxu0 %v900
    %v1051 = vpop.f32.mrf.mxu0
    %v1052 = vadd.f32 0.0, %v1051
    %v1053 = vpop.f32.mrf.mxu0
    %v1054 = vadd.f32 0.0, %v1053
    %1055 = vdwg.mxu0
    %v1056 = vsel %vm447, %v981, 0.0
    %v1057 = vsel %vm447, %v983, 0.0
    %v1058 = vadd.f32 %v1056, %v1057
    %v1059 = vsel %vm447, %v1052, 0.0
    %v1060 = vadd.f32 %v1058, %v1059
    %v1061 = vsel %vm447, %v1054, 0.0
    %v1062 = vadd.f32 %v1060, %v1061
    %1063 = vadd.xlane.f32.xlu0 %v1062
    %v1064 = vpop.xlane.xlu0 %1063
    %v1065 = vmul.f32 %v1064, 0.001953125
    %v1066 = vmul.f32 %v981, %v981
    %v1067 = vmul.f32 %v983, %v983
    %v1068 = vmul.f32 %v1052, %v1052
    %v1069 = vmul.f32 %v1054, %v1054
    %v1070 = vsel %vm447, %v1066, 0.0
    %v1071 = vsel %vm447, %v1067, 0.0
    %v1072 = vadd.f32 %v1070, %v1071
    %v1073 = vsel %vm447, %v1068, 0.0
    %v1074 = vadd.f32 %v1072, %v1073
    %v1075 = vsel %vm447, %v1069, 0.0
    %v1076 = vadd.f32 %v1074, %v1075
    %1077 = vadd.xlane.f32.xlu0 %v1076
    %v1078 = vpop.xlane.xlu0 %1077
    %v1079 = vmul.f32 %v1078, 0.001953125
    %v1080 = vmul.f32 %v1065, %v1065
    %v1081 = vsub.f32 %v1079, %v1080
    %v1082 = vmax.f32 %v1081, 0.0
    %v1083 = vld [vmem:[%s5] sm:$0xf]
    %v1084 = vadd.f32 %v1082, 1e-05
    %v1085 = vrsqrt.pop %v1084
    %v1086 = vmul.f32 %v1083, %v1085
    %v1087 = vld [vmem:[%s6] sm:$0xf]
    %v1088 = vmul.f32 %v1065, %v1086
    %v1089 = vsub.f32 %v1087, %v1088
    %1091 = vset.pattern.permute.xlu0 0
    %1092 = vperm.xlu0 %1091, %v1086
    %v1093 = vpop.permute.xlu0 %1092
    %v1095 = vmul.f32 %v981, %v1093
    %v1096 = vmul.f32 %v983, %v1093
    %v1097 = vmul.f32 %v1052, %v1093
    %v1098 = vmul.f32 %v1054, %v1093
    %1100 = vset.pattern.permute.xlu0 0
    %1101 = vperm.xlu0 %1100, %v1089
    %v1102 = vpop.permute.xlu0 %1101
    %v1104 = vadd.f32 %v1095, %v1102
    %v1105 = vadd.f32 %v1096, %v1102
    %v1106 = vadd.f32 %v1097, %v1102
    %v1107 = vadd.f32 %v1098, %v1102
    %v1108 = vadd.f32 %v1104, %v56
    %v1109 = vadd.f32 %v1105, %v68
    %v1110 = vadd.f32 %v1106, %v57
    %v1111 = vadd.f32 %v1107, %v69
    %vm1112 = vcmp.ge.f32.partialorder %v1108, 0.0
    %vm1113 = vcmp.ge.f32.partialorder %v1109, 0.0
    %vm1114 = vcmp.ge.f32.partialorder %v1110, 0.0
    %vm1115 = vcmp.ge.f32.partialorder %v1111, 0.0
    %v1116 = vmul.f32 %v1108, 0.2
    %v1117 = vmul.f32 %v1109, 0.2
    %v1118 = vmul.f32 %v1110, 0.2
    %v1119 = vmul.f32 %v1111, 0.2
    %v1120 = vsel %vm1112, %v1108, %v1116
    %v1121 = vsel %vm1113, %v1109, %v1117
    %v1122 = vsel %vm1114, %v1110, %v1118
    %v1123 = vsel %vm1115, %v1111, %v1119
    %v1128 = vcombine.low %v1120, %v1121
    %v1129 = vcombine.low %v1122, %v1123
    %1132 = vst [vmem:[#allocation8] sm:$0xff] %v1128
    %1133 = vst [vmem:[#allocation8 + $0x8] sm:$0xff] %v1129
    // Predicated region
    $region42: #{tpu_custom_call.1} parent=1 // pred_check
      _
    $region43: #{tpu_custom_call.1} parent=1 // pred_check_branch
      %1135 = sbr.rel (0) target = $region45
    $region44: #{tpu_custom_call.1} parent=1 // pred_region
      %s1137 = ssub.s32 256, 256
      %1138 = vsyncadd [#allocation5], %s1137
      %s1140 = sshll.u32 [#allocation8], 4
      %s1141 = int_to_ptr.vmem [resolvable:$true] %s1140
      %1143 = dma.vmem_to_hbm [thread:$0]  %s1141, 256, %s8, [#allocation5]
    $region45: #{tpu_custom_call.1} parent=1 // pred_fallthru
      _
    // Predicated region
    $region46: #{tpu_custom_call.1} parent=1 // pred_check
      _
    $region47: #{tpu_custom_call.1} parent=1 // pred_check_branch
      %1145 = sbr.rel (0) target = $region49
    $region48: #{tpu_custom_call.1} parent=1 // pred_region
      %1146 = dma.done [#allocation5], 256
    $region49: #{tpu_custom_call.1} parent=1 // pred_fallthru
      _
    %1147 = vsyncpa [#allocation4], 1
    %1148 = vsyncpa [#allocation7], 1
    %1149 = vsyncpa [#allocation5], 1

</llo_original>
